<compile_context>
chip_gen: v7x
topology: tpu7x:2x2x1
jax: 0.10.0
libtpu: 0.0.40
codegen_flags: <defaults>
</compile_context>

<pallas_src>
import jax
import jax.numpy as jnp
from jax import lax
from jax.experimental import pallas as pl
from jax.experimental.pallas import tpu as pltpu

EPS = 1e-5
HIDDEN = 256
LANE = 128


def _round_up(n, m):
    return (n + m - 1) // m * m


def _mlp_kernel(alphas_ref,        # SMEM (2,)  : PReLU alphas [a1, a2]
                x_ref,             # (TB, K_pad)
                w1_ref, b1_ref,    # (K_pad, H), (1, H)
                w2_ref, b2_ref,    # (H, H),     (1, H)      (BN1 folded in)
                w3_ref, b3_ref,    # (H, C_pad), (1, C_pad)  (BN2 folded in)
                o_ref):            # (TB, C_pad)
    a1 = alphas_ref[0]
    a2 = alphas_ref[1]

    # fc1 + PReLU   (Dropout is identity in eval mode)
    # TODO(synk): training-mode Dropout (random mask) not reproduced; eval-mode identity used.
    h = jnp.dot(x_ref[...], w1_ref[...], preferred_element_type=jnp.float32) + b1_ref[...]
    h = jnp.where(h > 0, h, a1 * h)

    # fc2 (BatchNorm1d #1 folded into w2/b2) + PReLU
    h = jnp.dot(h.astype(w2_ref.dtype), w2_ref[...],
                preferred_element_type=jnp.float32) + b2_ref[...]
    h = jnp.where(h > 0, h, a2 * h)

    # fc3 (BatchNorm1d #2 folded into w3/b3)
    out = jnp.dot(h.astype(w3_ref.dtype), w3_ref[...],
                  preferred_element_type=jnp.float32) + b3_ref[...]
    o_ref[...] = out.astype(o_ref.dtype)


def baseline_model_forward(x, params, *, tb=128, use_bf16=False):
    """x: (B, inputsize) float32. Returns (B, num_classes) float32."""
    B, K = x.shape
    num_classes = params["w3"].shape[1]
    f32 = jnp.float32
    mxu_dtype = jnp.bfloat16 if use_bf16 else f32

    # ---- Fold BatchNorm (running-stats) affines into the next Linear ----
    # BN(h) = s*h + t  with  s = g * rsqrt(v + eps),  t = be - m*s
    # BN(h) @ W + b == h @ (diag(s) W) + (t @ W + b)
    s1 = params["g1"] * lax.rsqrt(params["v1"] + EPS)            # (1, H)
    t1 = params["be1"] - params["m1"] * s1                       # (1, H)
    w2f = params["w2"] * s1.reshape(-1, 1)                       # (H, H)
    b2f = params["b2"] + t1 @ params["w2"]                       # (1, H)

    s2 = params["g2"] * lax.rsqrt(params["v2"] + EPS)
    t2 = params["be2"] - params["m2"] * s2
    w3f = params["w3"] * s2.reshape(-1, 1)                       # (H, C)
    b3f = params["b3"] + t2 @ params["w3"]                       # (1, C)

    # ---- Pad to TPU-friendly (lane-dense) shapes at the call boundary ----
    K_pad = _round_up(K, LANE)
    C_pad = _round_up(num_classes, LANE)
    TB = min(tb, _round_up(B, 8))          # batch tile (multiple of 8 sublanes)
    B_pad = _round_up(B, TB)

    x_p = jnp.zeros((B_pad, K_pad), f32).at[:B, :K].set(x).astype(mxu_dtype)
    w1_p = jnp.zeros((K_pad, HIDDEN), f32).at[:K, :].set(params["w1"]).astype(mxu_dtype)
    w2_p = w2f.astype(mxu_dtype)
    w3_p = jnp.zeros((HIDDEN, C_pad), f32).at[:, :num_classes].set(w3f).astype(mxu_dtype)
    b3_p = jnp.zeros((1, C_pad), f32).at[:, :num_classes].set(b3f)

    alphas = jnp.concatenate(
        [params["a1"].reshape(-1), params["a2"].reshape(-1)]).astype(f32)   # (2,)

    grid = (B_pad // TB,)
    const = lambda i: (0, 0)   # weights / biases stay VMEM-resident across steps

    itemsize = 2 if use_bf16 else 4
    flops = 2 * B_pad * (K_pad * HIDDEN + HIDDEN * HIDDEN + HIDDEN * C_pad)
    bytes_accessed = (
        (B_pad * K_pad + K_pad * HIDDEN + HIDDEN * HIDDEN + HIDDEN * C_pad) * itemsize
        + (2 * HIDDEN + C_pad) * 4          # biases
        + B_pad * C_pad * 4)                # output

    out = pl.pallas_call(
        _mlp_kernel,
        out_shape=jax.ShapeDtypeStruct((B_pad, C_pad), jnp.float32),
        grid=grid,
        in_specs=[
            pl.BlockSpec(memory_space=pltpu.MemorySpace.SMEM),        # alphas (scalars)
            pl.BlockSpec((TB, K_pad), lambda i: (i, 0)),              # x batch tile
            pl.BlockSpec((K_pad, HIDDEN), const),                     # w1
            pl.BlockSpec((1, HIDDEN), const),                         # b1
            pl.BlockSpec((HIDDEN, HIDDEN), const),                    # w2 (BN1 folded)
            pl.BlockSpec((1, HIDDEN), const),                         # b2 (BN1 folded)
            pl.BlockSpec((HIDDEN, C_pad), const),                     # w3 (BN2 folded)
            pl.BlockSpec((1, C_pad), const),                          # b3 (BN2 folded)
        ],
        out_specs=pl.BlockSpec((TB, C_pad), lambda i: (i, 0)),
        compiler_params=pltpu.CompilerParams(
            dimension_semantics=("parallel",)),
        cost_estimate=pl.CostEstimate(flops=flops, transcendentals=0,
                                      bytes_accessed=bytes_accessed),
    )(alphas, x_p, w1_p, params["b1"], w2_p, b2f, w3_p, b3_p)

    return out[:B, :num_classes]


def init_params(key, inputsize, num_classes):
    """Deterministic synthetic parameters matching the PyTorch module shapes."""
    ks = jax.random.split(key, 6)

    def linear_init(kw, fan_in, fan_out):
        bound = 1.0 / jnp.sqrt(fan_in)
        w = jax.random.uniform(kw, (fan_in, fan_out), jnp.float32, -bound, bound)
        b = jax.random.uniform(jax.random.fold_in(kw, 1), (1, fan_out),
                               jnp.float32, -bound, bound)
        return w, b

    w1, b1 = linear_init(ks[0], inputsize, HIDDEN)
    w2, b2 = linear_init(ks[1], HIDDEN, HIDDEN)
    w3, b3 = linear_init(ks[2], HIDDEN, num_classes)

    # PReLU default init: single shared alpha = 0.25
    a1 = jnp.full((1, 1), 0.25, jnp.float32)
    a2 = jnp.full((1, 1), 0.25, jnp.float32)

    # BatchNorm1d running stats / affine (eval mode), deterministically perturbed.
    g1 = jnp.ones((1, HIDDEN), jnp.float32) + 0.1 * jax.random.normal(ks[3], (1, HIDDEN))
    be1 = 0.1 * jax.random.normal(ks[4], (1, HIDDEN), jnp.float32)
    m1 = jnp.zeros((1, HIDDEN), jnp.float32)
    v1 = jnp.ones((1, HIDDEN), jnp.float32)
    g2 = jnp.ones((1, HIDDEN), jnp.float32)
    be2 = jnp.zeros((1, HIDDEN), jnp.float32)
    m2 = 0.05 * jax.random.normal(ks[5], (1, HIDDEN), jnp.float32)
    v2 = jnp.ones((1, HIDDEN), jnp.float32) + 0.2 * jnp.abs(
        jax.random.normal(jax.random.fold_in(ks[5], 7), (1, HIDDEN)))

    return dict(w1=w1, b1=b1, a1=a1, g1=g1, be1=be1, m1=m1, v1=v1,
                w2=w2, b2=b2, a2=a2, g2=g2, be2=be2, m2=m2, v2=v2,
                w3=w3, b3=b3)


def reference_forward(x, p):
    """Unfolded pure-JAX reference (matches PyTorch eval-mode forward)."""
    def prelu(h, a):
        return jnp.where(h > 0, h, a[0, 0] * h)

    def bn(h, g, be, m, v):
        return (h - m) * lax.rsqrt(v + EPS) * g + be

    h = x @ p["w1"] + p["b1"]
    h = bn(prelu(h, p["a1"]), p["g1"], p["be1"], p["m1"], p["v1"])
    h = h @ p["w2"] + p["b2"]
    h = bn(prelu(h, p["a2"]), p["g2"], p["be2"], p["m2"], p["v2"])
    return h @ p["w3"] + p["b3"]


if __name__ == "__main__":
    key = jax.random.PRNGKey(0)
    k_x, k_p, k_x2 = jax.random.split(key, 3)

    inputsize = 32
    num_classes = 10
    params = init_params(k_p, inputsize, num_classes)

    # Small-batch check (single grid step, TB = 8).
    batch = 8
    x = jax.random.normal(k_x, (batch, inputsize), jnp.float32)
    out = jax.block_until_ready(baseline_model_forward(x, params))
    ref = reference_forward(x, params)
    assert out.shape == (batch, num_classes)
    assert jnp.allclose(out, ref, atol=1e-4, rtol=1e-4), "mismatch vs reference (B=8)"

    # Larger, non-multiple batch: exercises TB=128 tiling, batch padding and the
    # parallel grid axis.
    batch2 = 200
    x2 = jax.random.normal(k_x2, (batch2, inputsize), jnp.float32)
    out2 = jax.block_until_ready(baseline_model_forward(x2, params))
    ref2 = reference_forward(x2, params)
    assert out2.shape == (batch2, num_classes)
    assert jnp.allclose(out2, ref2, atol=1e-4, rtol=1e-4), "mismatch vs reference (B=200)"

    print("KERNEL_OK")
</pallas_src>

<mosaic_0001>
module attributes {stable_mosaic.version = 11 : i64} {
  func.func @_mlp_kernel(%arg0: i32, %arg1: memref<2xf32, #tpu.memory_space<smem>>, %arg2: memref<8x128xf32, #tpu.memory_space<vmem>>, %arg3: memref<128x256xf32, #tpu.memory_space<vmem>>, %arg4: memref<1x256xf32, #tpu.memory_space<vmem>>, %arg5: memref<256x256xf32, #tpu.memory_space<vmem>>, %arg6: memref<1x256xf32, #tpu.memory_space<vmem>>, %arg7: memref<256x128xf32, #tpu.memory_space<vmem>>, %arg8: memref<1x128xf32, #tpu.memory_space<vmem>>, %arg9: memref<8x128xf32, #tpu.memory_space<vmem>>) attributes {dimension_semantics = [#tpu.dimension_semantics<parallel>], iteration_bounds = array<i64: 1>, scalar_prefetch = 0 : i64, scratch_operands = 0 : i64, tpu.core_type = #tpu.core_type<tc>, window_params = [{transform_indices = @transform_0, window_bounds = array<i64: 2>}, {transform_indices = @transform_1, window_bounds = array<i64: 8, 128>}, {pipeline_mode = #tpu.pipeline_mode<synchronous>, transform_indices = @transform_2, window_bounds = array<i64: 128, 256>}, {pipeline_mode = #tpu.pipeline_mode<synchronous>, transform_indices = @transform_3, window_bounds = array<i64: 1, 256>}, {pipeline_mode = #tpu.pipeline_mode<synchronous>, transform_indices = @transform_4, window_bounds = array<i64: 256, 256>}, {pipeline_mode = #tpu.pipeline_mode<synchronous>, transform_indices = @transform_5, window_bounds = array<i64: 1, 256>}, {pipeline_mode = #tpu.pipeline_mode<synchronous>, transform_indices = @transform_6, window_bounds = array<i64: 256, 128>}, {pipeline_mode = #tpu.pipeline_mode<synchronous>, transform_indices = @transform_7, window_bounds = array<i64: 1, 128>}, {transform_indices = @transform_8, window_bounds = array<i64: 8, 128>}]} {
    %c0 = arith.constant 0 : index
    %0 = memref.load %arg1[%c0] : memref<2xf32, #tpu.memory_space<smem>>
    %c1 = arith.constant 1 : index
    %1 = memref.load %arg1[%c1] : memref<2xf32, #tpu.memory_space<smem>>
    %c0_0 = arith.constant 0 : index
    %c0_1 = arith.constant 0 : index
    %2 = vector.load %arg2[%c0_0, %c0_1] : memref<8x128xf32, #tpu.memory_space<vmem>>, vector<8x128xf32>
    %c0_2 = arith.constant 0 : index
    %c0_3 = arith.constant 0 : index
    %3 = vector.load %arg3[%c0_2, %c0_3] : memref<128x256xf32, #tpu.memory_space<vmem>>, vector<128x256xf32>
    %cst = arith.constant dense<0.000000e+00> : vector<8x256xf32>
    %4 = tpu.matmul %2, %3, %cst {dimension_numbers = #tpu.dot_dimension_numbers<[1], [0], [0], [1], [0, 0, 1, 1], [], []>} : vector<8x128xf32>, vector<128x256xf32>, vector<8x256xf32> -> vector<8x256xf32>
    %c0_4 = arith.constant 0 : index
    %c0_5 = arith.constant 0 : index
    %5 = vector.load %arg4[%c0_4, %c0_5] : memref<1x256xf32, #tpu.memory_space<vmem>>, vector<1x256xf32>
    %6 = vector.broadcast %5 : vector<1x256xf32> to vector<8x256xf32>
    %7 = arith.addf %4, %6 : vector<8x256xf32>
    %cst_6 = arith.constant 0.000000e+00 : f32
    %8 = vector.broadcast %cst_6 : f32 to vector<8x256xf32>
    %9 = arith.cmpf ogt, %7, %8 : vector<8x256xf32>
    %10 = vector.broadcast %0 : f32 to vector<8x256xf32>
    %11 = arith.mulf %10, %7 : vector<8x256xf32>
    %12 = arith.select %9, %7, %11 : vector<8x256xi1>, vector<8x256xf32>
    %c0_7 = arith.constant 0 : index
    %c0_8 = arith.constant 0 : index
    %13 = vector.load %arg5[%c0_7, %c0_8] : memref<256x256xf32, #tpu.memory_space<vmem>>, vector<256x256xf32>
    %cst_9 = arith.constant dense<0.000000e+00> : vector<8x256xf32>
    %14 = tpu.matmul %12, %13, %cst_9 {dimension_numbers = #tpu.dot_dimension_numbers<[1], [0], [0], [1], [0, 0, 1, 1], [], []>} : vector<8x256xf32>, vector<256x256xf32>, vector<8x256xf32> -> vector<8x256xf32>
    %c0_10 = arith.constant 0 : index
    %c0_11 = arith.constant 0 : index
    %15 = vector.load %arg6[%c0_10, %c0_11] : memref<1x256xf32, #tpu.memory_space<vmem>>, vector<1x256xf32>
    %16 = vector.broadcast %15 : vector<1x256xf32> to vector<8x256xf32>
    %17 = arith.addf %14, %16 : vector<8x256xf32>
    %cst_12 = arith.constant 0.000000e+00 : f32
    %18 = vector.broadcast %cst_12 : f32 to vector<8x256xf32>
    %19 = arith.cmpf ogt, %17, %18 : vector<8x256xf32>
    %20 = vector.broadcast %1 : f32 to vector<8x256xf32>
    %21 = arith.mulf %20, %17 : vector<8x256xf32>
    %22 = arith.select %19, %17, %21 : vector<8x256xi1>, vector<8x256xf32>
    %c0_13 = arith.constant 0 : index
    %c0_14 = arith.constant 0 : index
    %23 = vector.load %arg7[%c0_13, %c0_14] : memref<256x128xf32, #tpu.memory_space<vmem>>, vector<256x128xf32>
    %cst_15 = arith.constant dense<0.000000e+00> : vector<8x128xf32>
    %24 = tpu.matmul %22, %23, %cst_15 {dimension_numbers = #tpu.dot_dimension_numbers<[1], [0], [0], [1], [0, 0, 1, 1], [], []>} : vector<8x256xf32>, vector<256x128xf32>, vector<8x128xf32> -> vector<8x128xf32>
    %c0_16 = arith.constant 0 : index
    %c0_17 = arith.constant 0 : index
    %25 = vector.load %arg8[%c0_16, %c0_17] : memref<1x128xf32, #tpu.memory_space<vmem>>, vector<1x128xf32>
    %26 = vector.broadcast %25 : vector<1x128xf32> to vector<8x128xf32>
    %27 = arith.addf %24, %26 : vector<8x128xf32>
    %c0_18 = arith.constant 0 : index
    %c0_19 = arith.constant 0 : index
    %28 = vector.load %arg9[%c0_18, %c0_19] : memref<8x128xf32, #tpu.memory_space<vmem>>, vector<8x128xf32>
    tpu.vector_store %arg9[%c0_18, %c0_19], %27 {strides = array<i32>} : memref<8x128xf32, #tpu.memory_space<vmem>>, vector<8x128xf32>,
    return
  }
  func.func @transform_0(%arg0: i32) -> i32 {
    %c0_i32 = arith.constant 0 : i32
    %c0_i32_0 = arith.constant 0 : i32
    return %c0_i32 : i32
  }
  func.func @transform_1(%arg0: i32) -> (i32, i32) {
    %c0_i32 = arith.constant 0 : i32
    %c0_i32_0 = arith.constant 0 : i32
    return %arg0, %c0_i32 : i32, i32
  }
  func.func @transform_2(%arg0: i32) -> (i32, i32) {
    %c0_i32 = arith.constant 0 : i32
    %c0_i32_0 = arith.constant 0 : i32
    %c0_i32_1 = arith.constant 0 : i32
    return %c0_i32, %c0_i32_0 : i32, i32
  }
  func.func @transform_3(%arg0: i32) -> (i32, i32) {
    %c0_i32 = arith.constant 0 : i32
    %c0_i32_0 = arith.constant 0 : i32
    %c0_i32_1 = arith.constant 0 : i32
    return %c0_i32, %c0_i32_0 : i32, i32
  }
  func.func @transform_4(%arg0: i32) -> (i32, i32) {
    %c0_i32 = arith.constant 0 : i32
    %c0_i32_0 = arith.constant 0 : i32
    %c0_i32_1 = arith.constant 0 : i32
    return %c0_i32, %c0_i32_0 : i32, i32
  }
  func.func @transform_5(%arg0: i32) -> (i32, i32) {
    %c0_i32 = arith.constant 0 : i32
    %c0_i32_0 = arith.constant 0 : i32
    %c0_i32_1 = arith.constant 0 : i32
    return %c0_i32, %c0_i32_0 : i32, i32
  }
  func.func @transform_6(%arg0: i32) -> (i32, i32) {
    %c0_i32 = arith.constant 0 : i32
    %c0_i32_0 = arith.constant 0 : i32
    %c0_i32_1 = arith.constant 0 : i32
    return %c0_i32, %c0_i32_0 : i32, i32
  }
  func.func @transform_7(%arg0: i32) -> (i32, i32) {
    %c0_i32 = arith.constant 0 : i32
    %c0_i32_0 = arith.constant 0 : i32
    %c0_i32_1 = arith.constant 0 : i32
    return %c0_i32, %c0_i32_0 : i32, i32
  }
  func.func @transform_8(%arg0: i32) -> (i32, i32) {
    %c0_i32 = arith.constant 0 : i32
    %c0_i32_0 = arith.constant 0 : i32
    return %arg0, %c0_i32 : i32, i32
  }
}

</mosaic_0001>

<llo_original>
// kernel: tpu_custom_call.1
$region0: #{tpu_custom_call.1}
  #allocation0 [shape = 'u32[]', space=smem, size = 0x4, offset = 0x4, fixed_abs, tag = 'smem constant byte address 0x4 - core index']
  #allocation1 [shape = 'u32[144,128]{1,0:T(1,128)}', space=vmem, size = 0x12000, scoped, tag = 'internal scratch']
  %s0 = inlined_call_operand.hbm [shape: f32[2], index: 0, kind: input, shape index: {}]
  %s1 = inlined_call_operand.hbm [shape: f32[8,128], index: 1, kind: input, shape index: {}]
  %s2 = inlined_call_operand.hbm [shape: f32[128,256], index: 2, kind: input, shape index: {}]
  %s3 = inlined_call_operand.vmem [shape: f32[1,256], index: 3, kind: input, shape index: {}]
  %s4 = inlined_call_operand.hbm [shape: f32[256,256], index: 4, kind: input, shape index: {}]
  %s5 = inlined_call_operand.vmem [shape: f32[1,256], index: 5, kind: input, shape index: {}]
  %s6 = inlined_call_operand.hbm [shape: f32[256,128], index: 6, kind: input, shape index: {}]
  %s7 = inlined_call_operand.vmem [shape: f32[1,128], index: 7, kind: input, shape index: {}]
  %s8 = inlined_call_operand.hbm [shape: f32[8,128], index: 8, kind: output, shape index: {}]
  %s9 = sld [smem:[#allocation0]]
  $region62: #{tpu_custom_call.1} parent=0
    _
  %s11 = ssub.s32 1, %s9
  %s12 = scalar_select 0, %s11, %s9
  $region1: #{tpu_custom_call.1} parent=0
    #allocation2 [shape = 'u8[512]{0}', space=smem, size = 0x200, scoped, tag = 'input window, operand 0, single buffered']
    #allocation3 [shape = 's32[1]{0}', space=sflag, size = 0x4, scoped, tag = 'scoped memory for tpu_custom_call.1']
    #allocation4 [shape = 's32[1]{0}', space=sflag, size = 0x4, scoped, tag = 'scoped memory for tpu_custom_call.1']
    #allocation5 [shape = 's32[1]{0}', space=sflag, size = 0x4, scoped, tag = 'scoped memory for tpu_custom_call.1']
    #allocation6 [shape = 'u8[4096]{0}', space=vmem, size = 0x1000, scoped, tag = 'input window, operand 1, single buffered']
    #allocation7 [shape = 'u8[131072]{0}', space=vmem, size = 0x20000, scoped, tag = 'input window, operand 2, single buffered']
    #allocation8 [shape = 's32[1]{0}', space=sflag, size = 0x4, scoped, tag = 'scoped memory for tpu_custom_call.1']
    #allocation9 [shape = 'u8[262144]{0}', space=vmem, size = 0x40000, scoped, tag = 'input window, operand 4, single buffered']
    #allocation10 [shape = 'u8[131072]{0}', space=vmem, size = 0x20000, scoped, tag = 'input window, operand 6, single buffered']
    #allocation11 [shape = 's32[1]{0}', space=sflag, size = 0x4, scoped, tag = 'scoped memory for tpu_custom_call.1']
    #allocation12 [shape = 'u8[4096]{0}', space=vmem, size = 0x1000, scoped, tag = 'output window, operand 0, single buffered']
    %13 = vsyncpa [#allocation5], 0
    %14 = vsyncpa [#allocation3], 0
    %15 = vsyncpa [#allocation8], 0
    %16 = vsyncpa [#allocation11], 0
    %17 = vsyncpa [#allocation4], 0
    // Predicated region
    $region2: #{tpu_custom_call.1} parent=1 // pred_check
      _
    $region3: #{tpu_custom_call.1} parent=1 // pred_check_branch
      %19 = sbr.rel (0) target = $region5
    $region4: #{tpu_custom_call.1} parent=1 // pred_region
      %s21 = ssub.s32 16, 16
      %22 = vsyncadd [#allocation5], %s21
      %25 = dma.hbm_to_smem %s0, 16, [#allocation2], [#allocation5]
    $region5: #{tpu_custom_call.1} parent=1 // pred_fallthru
      _
    // Predicated region
    $region6: #{tpu_custom_call.1} parent=1 // pred_check
      _
    $region7: #{tpu_custom_call.1} parent=1 // pred_check_branch
      %27 = sbr.rel (0) target = $region9
    $region8: #{tpu_custom_call.1} parent=1 // pred_region
      %s29 = ssub.s32 128, 128
      %30 = vsyncadd [#allocation3], %s29
      %s32 = sshll.u32 [#allocation6], 4
      %s33 = int_to_ptr.vmem [resolvable:$true] %s32
      %35 = dma.hbm_to_vmem [thread:$0]  %s1, 128, %s33, [#allocation3]
    $region9: #{tpu_custom_call.1} parent=1 // pred_fallthru
      _
    // Predicated region
    $region10: #{tpu_custom_call.1} parent=1 // pred_check
      _
    $region11: #{tpu_custom_call.1} parent=1 // pred_check_branch
      %37 = sbr.rel (0) target = $region13
    $region12: #{tpu_custom_call.1} parent=1 // pred_region
      %s39 = ssub.s32 4096, 4096
      %40 = vsyncadd [#allocation8], %s39
      %s41 = sshll.u32 [#allocation7], 4
      %s42 = int_to_ptr.vmem [resolvable:$true] %s41
      %47 = dma.hbm_to_vmem [thread:$0]  %s2, 4096, %s42, [#allocation8], 256, 256, 16
    $region13: #{tpu_custom_call.1} parent=1 // pred_fallthru
      _
    // Predicated region
    $region14: #{tpu_custom_call.1} parent=1 // pred_check
      _
    $region15: #{tpu_custom_call.1} parent=1 // pred_check_branch
      %49 = sbr.rel (0) target = $region17
    $region16: #{tpu_custom_call.1} parent=1 // pred_region
      _
    $region17: #{tpu_custom_call.1} parent=1 // pred_fallthru
      _
    // Predicated region
    $region18: #{tpu_custom_call.1} parent=1 // pred_check
      _
    $region19: #{tpu_custom_call.1} parent=1 // pred_check_branch
      %51 = sbr.rel (0) target = $region21
    $region20: #{tpu_custom_call.1} parent=1 // pred_region
      %s53 = ssub.s32 8192, 8192
      %54 = vsyncadd [#allocation8], %s53
      %s55 = sshll.u32 [#allocation9], 4
      %s56 = int_to_ptr.vmem [resolvable:$true] %s55
      %61 = dma.hbm_to_vmem [thread:$0]  %s4, 8192, %s56, [#allocation8], 256, 256, 16
    $region21: #{tpu_custom_call.1} parent=1 // pred_fallthru
      _
    // Predicated region
    $region22: #{tpu_custom_call.1} parent=1 // pred_check
      _
    $region23: #{tpu_custom_call.1} parent=1 // pred_check_branch
      %63 = sbr.rel (0) target = $region25
    $region24: #{tpu_custom_call.1} parent=1 // pred_region
      _
    $region25: #{tpu_custom_call.1} parent=1 // pred_fallthru
      _
    // Predicated region
    $region26: #{tpu_custom_call.1} parent=1 // pred_check
      _
    $region27: #{tpu_custom_call.1} parent=1 // pred_check_branch
      %65 = sbr.rel (0) target = $region29
    $region28: #{tpu_custom_call.1} parent=1 // pred_region
      %s67 = ssub.s32 4096, 4096
      %68 = vsyncadd [#allocation11], %s67
      %s69 = sshll.u32 [#allocation10], 4
      %s70 = int_to_ptr.vmem [resolvable:$true] %s69
      %75 = dma.hbm_to_vmem [thread:$0]  %s6, 4096, %s70, [#allocation11], 128, 128, 8
    $region29: #{tpu_custom_call.1} parent=1 // pred_fallthru
      _
    // Predicated region
    $region30: #{tpu_custom_call.1} parent=1 // pred_check
      _
    $region31: #{tpu_custom_call.1} parent=1 // pred_check_branch
      %77 = sbr.rel (0) target = $region33
    $region32: #{tpu_custom_call.1} parent=1 // pred_region
      _
    $region33: #{tpu_custom_call.1} parent=1 // pred_fallthru
      _
    // Predicated region
    $region34: #{tpu_custom_call.1} parent=1 // pred_check
      _
    $region35: #{tpu_custom_call.1} parent=1 // pred_check_branch
      %79 = sbr.rel (0) target = $region37
    $region36: #{tpu_custom_call.1} parent=1 // pred_region
      %80 = dma.done [#allocation5], 16
    $region37: #{tpu_custom_call.1} parent=1 // pred_fallthru
      _
    // Predicated region
    $region38: #{tpu_custom_call.1} parent=1 // pred_check
      _
    $region39: #{tpu_custom_call.1} parent=1 // pred_check_branch
      %82 = sbr.rel (0) target = $region41
    $region40: #{tpu_custom_call.1} parent=1 // pred_region
      %83 = dma.done [#allocation3], 128
    $region41: #{tpu_custom_call.1} parent=1 // pred_fallthru
      _
    // Predicated region
    $region42: #{tpu_custom_call.1} parent=1 // pred_check
      _
    $region43: #{tpu_custom_call.1} parent=1 // pred_check_branch
      %85 = sbr.rel (0) target = $region45
    $region44: #{tpu_custom_call.1} parent=1 // pred_region
      %86 = dma.done [#allocation8], 4096
    $region45: #{tpu_custom_call.1} parent=1 // pred_fallthru
      _
    // Predicated region
    $region46: #{tpu_custom_call.1} parent=1 // pred_check
      _
    $region47: #{tpu_custom_call.1} parent=1 // pred_check_branch
      %88 = sbr.rel (0) target = $region49
    $region48: #{tpu_custom_call.1} parent=1 // pred_region
      %89 = dma.done [#allocation8], 8192
    $region49: #{tpu_custom_call.1} parent=1 // pred_fallthru
      _
    // Predicated region
    $region50: #{tpu_custom_call.1} parent=1 // pred_check
      _
    $region51: #{tpu_custom_call.1} parent=1 // pred_check_branch
      %91 = sbr.rel (0) target = $region53
    $region52: #{tpu_custom_call.1} parent=1 // pred_region
      %92 = dma.done [#allocation11], 4096
    $region53: #{tpu_custom_call.1} parent=1 // pred_fallthru
      _
    %93 = sfence
    %s94 = sld [smem:[#allocation2]]
    %s95 = sld [smem:[#allocation2 + $0x1]]
    %v96 = vld [vmem:[#allocation6] sm:$0xff]
    %v97 = vld [vmem:[#allocation7] sm:$0xff]
    %v98 = vld [vmem:[#allocation7 + $0x8] sm:$0xff]
    %v99 = vld [vmem:[#allocation7 + $0x10] sm:$0xff]
    %v100 = vld [vmem:[#allocation7 + $0x18] sm:$0xff]
    %v101 = vld [vmem:[#allocation7 + $0x20] sm:$0xff]
    %v102 = vld [vmem:[#allocation7 + $0x28] sm:$0xff]
    %v103 = vld [vmem:[#allocation7 + $0x30] sm:$0xff]
    %v104 = vld [vmem:[#allocation7 + $0x38] sm:$0xff]
    %v105 = vld [vmem:[#allocation7 + $0x40] sm:$0xff]
    %v106 = vld [vmem:[#allocation7 + $0x48] sm:$0xff]
    %v107 = vld [vmem:[#allocation7 + $0x50] sm:$0xff]
    %v108 = vld [vmem:[#allocation7 + $0x58] sm:$0xff]
    %v109 = vld [vmem:[#allocation7 + $0x60] sm:$0xff]
    %v110 = vld [vmem:[#allocation7 + $0x68] sm:$0xff]
    %v111 = vld [vmem:[#allocation7 + $0x70] sm:$0xff]
    %v112 = vld [vmem:[#allocation7 + $0x78] sm:$0xff]
    %v113 = vld [vmem:[#allocation7 + $0x80] sm:$0xff]
    %v114 = vld [vmem:[#allocation7 + $0x88] sm:$0xff]
    %v115 = vld [vmem:[#allocation7 + $0x90] sm:$0xff]
    %v116 = vld [vmem:[#allocation7 + $0x98] sm:$0xff]
    %v117 = vld [vmem:[#allocation7 + $0xa0] sm:$0xff]
    %v118 = vld [vmem:[#allocation7 + $0xa8] sm:$0xff]
    %v119 = vld [vmem:[#allocation7 + $0xb0] sm:$0xff]
    %v120 = vld [vmem:[#allocation7 + $0xb8] sm:$0xff]
    %v121 = vld [vmem:[#allocation7 + $0xc0] sm:$0xff]
    %v122 = vld [vmem:[#allocation7 + $0xc8] sm:$0xff]
    %v123 = vld [vmem:[#allocation7 + $0xd0] sm:$0xff]
    %v124 = vld [vmem:[#allocation7 + $0xd8] sm:$0xff]
    %v125 = vld [vmem:[#allocation7 + $0xe0] sm:$0xff]
    %v126 = vld [vmem:[#allocation7 + $0xe8] sm:$0xff]
    %v127 = vld [vmem:[#allocation7 + $0xf0] sm:$0xff]
    %v128 = vld [vmem:[#allocation7 + $0xf8] sm:$0xff]
    %v129 = vld [vmem:[%s3] sm:$0x3]
    %v131 = vlaneseq
    %v132 = vshrl.u32 %v131, 7
    %v133 = vsub.s32 0, %v132
    %v134 = vrot.slane %v129, %v133
    %v135 = vlaneseq
    %v136 = vshrl.u32 %v135, 7
    %v137 = vsub.s32 1, %v136
    %v138 = vrot.slane %v129, %v137
    %141 = vmatprep.subr.mxu0 %v98
    %142 = vmatpush1.msra.mxu0 %v97
    %143 = vmatprep.subr.mxu0 %v100
    %144 = vmatpush1.msra.mxu0 %v99
    %145 = vmatprep.subr.mxu0 %v102
    %146 = vmatpush1.msra.mxu0 %v101
    %147 = vmatprep.subr.mxu0 %v104
    %148 = vmatpush1.msra.mxu0 %v103
    %149 = vmatprep.subr.mxu0 %v106
    %150 = vmatpush1.msra.mxu0 %v105
    %151 = vmatprep.subr.mxu0 %v108
    %152 = vmatpush1.msra.mxu0 %v107
    %153 = vmatprep.subr.mxu0 %v110
    %154 = vmatpush1.msra.mxu0 %v109
    %155 = vmatprep.subr.mxu0 %v112
    %156 = vmatpush1.msra.mxu0 %v111
    %157 = vmatprep.subr.mxu0 %v114
    %158 = vmatpush1.msra.mxu0 %v113
    %159 = vmatprep.subr.mxu0 %v116
    %160 = vmatpush1.msra.mxu0 %v115
    %161 = vmatprep.subr.mxu0 %v118
    %162 = vmatpush1.msra.mxu0 %v117
    %163 = vmatprep.subr.mxu0 %v120
    %164 = vmatpush1.msra.mxu0 %v119
    %165 = vmatprep.subr.mxu0 %v122
    %166 = vmatpush1.msra.mxu0 %v121
    %167 = vmatprep.subr.mxu0 %v124
    %168 = vmatpush1.msra.mxu0 %v123
    %169 = vmatprep.subr.mxu0 %v126
    %170 = vmatpush1.msra.mxu0 %v125
    %171 = vmatprep.subr.mxu0 %v128
    %172 = vmatpush1.msra.mxu0 %v127
    %173 = vmatprep.subr.mxu0 0.0
    %174 = vmatpush1.msra.mxu0 0.0
    %175 = vmatprep.subr.mxu0 0.0
    %176 = vmatpush1.msra.mxu0 0.0
    %177 = vmatprep.subr.mxu0 0.0
    %178 = vmatpush1.msra.mxu0 0.0
    %179 = vmatprep.subr.mxu0 0.0
    %180 = vmatpush1.msra.mxu0 0.0
    %181 = vmatprep.subr.mxu0 0.0
    %182 = vmatpush1.msra.mxu0 0.0
    %183 = vmatprep.subr.mxu0 0.0
    %184 = vmatpush1.msra.mxu0 0.0
    %185 = vmatprep.subr.mxu0 0.0
    %186 = vmatpush1.msra.mxu0 0.0
    %187 = vmatprep.subr.mxu0 0.0
    %188 = vmatpush1.msra.mxu0 0.0
    %189 = vmatprep.subr.mxu0 0.0
    %190 = vmatpush1.msra.mxu0 0.0
    %191 = vmatprep.subr.mxu0 0.0
    %192 = vmatpush1.msra.mxu0 0.0
    %193 = vmatprep.subr.mxu0 0.0
    %194 = vmatpush1.msra.mxu0 0.0
    %195 = vmatprep.subr.mxu0 0.0
    %196 = vmatpush1.msra.mxu0 0.0
    %197 = vmatprep.subr.mxu0 0.0
    %198 = vmatpush1.msra.mxu0 0.0
    %199 = vmatprep.subr.mxu0 0.0
    %200 = vmatpush1.msra.mxu0 0.0
    %201 = vmatprep.subr.mxu0 0.0
    %202 = vmatpush1.msra.mxu0 0.0
    %203 = vmatprep.subr.mxu0 0.0
    %204 = vmatpush1.msra.mxu0 0.0
    %205 = vmatprep.mubr.f32.mxu0 0.0
    %206 = vmatmul.mubr.f32.gmra.mrb[0].mxu0 %v96
    %v207 = vpop.f32.mrb[0].mxu0
    %v208 = vadd.f32 %v134, %v207
    %v209 = vpop.f32.mrb[0].mxu0
    %v210 = vadd.f32 %v138, %v209
    %211 = vdwg.mxu0
    %vm212 = vcmp.gt.f32.partialorder %v208, 0.0
    %vm213 = vcmp.gt.f32.partialorder %v210, 0.0
    %v214 = vstv %s94
    %v215 = vmul.f32 %v214, %v208
    %v216 = vmul.f32 %v214, %v210
    %v217 = vsel %vm212, %v208, %v215
    %v218 = vsel %vm213, %v210, %v216
    %v219 = vld [vmem:[#allocation9] sm:$0xff]
    %v220 = vld [vmem:[#allocation9 + $0x8] sm:$0xff]
    %v221 = vld [vmem:[#allocation9 + $0x10] sm:$0xff]
    %v222 = vld [vmem:[#allocation9 + $0x18] sm:$0xff]
    %v223 = vld [vmem:[#allocation9 + $0x20] sm:$0xff]
    %v224 = vld [vmem:[#allocation9 + $0x28] sm:$0xff]
    %v225 = vld [vmem:[#allocation9 + $0x30] sm:$0xff]
    %v226 = vld [vmem:[#allocation9 + $0x38] sm:$0xff]
    %v227 = vld [vmem:[#allocation9 + $0x40] sm:$0xff]
    %v228 = vld [vmem:[#allocation9 + $0x48] sm:$0xff]
    %v229 = vld [vmem:[#allocation9 + $0x50] sm:$0xff]
    %v230 = vld [vmem:[#allocation9 + $0x58] sm:$0xff]
    %v231 = vld [vmem:[#allocation9 + $0x60] sm:$0xff]
    %v232 = vld [vmem:[#allocation9 + $0x68] sm:$0xff]
    %v233 = vld [vmem:[#allocation9 + $0x70] sm:$0xff]
    %v234 = vld [vmem:[#allocation9 + $0x78] sm:$0xff]
    %v235 = vld [vmem:[#allocation9 + $0x80] sm:$0xff]
    %v236 = vld [vmem:[#allocation9 + $0x88] sm:$0xff]
    %v237 = vld [vmem:[#allocation9 + $0x90] sm:$0xff]
    %v238 = vld [vmem:[#allocation9 + $0x98] sm:$0xff]
    %v239 = vld [vmem:[#allocation9 + $0xa0] sm:$0xff]
    %v240 = vld [vmem:[#allocation9 + $0xa8] sm:$0xff]
    %v241 = vld [vmem:[#allocation9 + $0xb0] sm:$0xff]
    %v242 = vld [vmem:[#allocation9 + $0xb8] sm:$0xff]
    %v243 = vld [vmem:[#allocation9 + $0xc0] sm:$0xff]
    %v244 = vld [vmem:[#allocation9 + $0xc8] sm:$0xff]
    %v245 = vld [vmem:[#allocation9 + $0xd0] sm:$0xff]
    %v246 = vld [vmem:[#allocation9 + $0xd8] sm:$0xff]
    %v247 = vld [vmem:[#allocation9 + $0xe0] sm:$0xff]
    %v248 = vld [vmem:[#allocation9 + $0xe8] sm:$0xff]
    %v249 = vld [vmem:[#allocation9 + $0xf0] sm:$0xff]
    %v250 = vld [vmem:[#allocation9 + $0xf8] sm:$0xff]
    %v251 = vld [vmem:[#allocation9 + $0x100] sm:$0xff]
    %v252 = vld [vmem:[#allocation9 + $0x108] sm:$0xff]
    %v253 = vld [vmem:[#allocation9 + $0x110] sm:$0xff]
    %v254 = vld [vmem:[#allocation9 + $0x118] sm:$0xff]
    %v255 = vld [vmem:[#allocation9 + $0x120] sm:$0xff]
    %v256 = vld [vmem:[#allocation9 + $0x128] sm:$0xff]
    %v257 = vld [vmem:[#allocation9 + $0x130] sm:$0xff]
    %v258 = vld [vmem:[#allocation9 + $0x138] sm:$0xff]
    %v259 = vld [vmem:[#allocation9 + $0x140] sm:$0xff]
    %v260 = vld [vmem:[#allocation9 + $0x148] sm:$0xff]
    %v261 = vld [vmem:[#allocation9 + $0x150] sm:$0xff]
    %v262 = vld [vmem:[#allocation9 + $0x158] sm:$0xff]
    %v263 = vld [vmem:[#allocation9 + $0x160] sm:$0xff]
    %v264 = vld [vmem:[#allocation9 + $0x168] sm:$0xff]
    %v265 = vld [vmem:[#allocation9 + $0x170] sm:$0xff]
    %v266 = vld [vmem:[#allocation9 + $0x178] sm:$0xff]
    %v267 = vld [vmem:[#allocation9 + $0x180] sm:$0xff]
    %v268 = vld [vmem:[#allocation9 + $0x188] sm:$0xff]
    %v269 = vld [vmem:[#allocation9 + $0x190] sm:$0xff]
    %v270 = vld [vmem:[#allocation9 + $0x198] sm:$0xff]
    %v271 = vld [vmem:[#allocation9 + $0x1a0] sm:$0xff]
    %v272 = vld [vmem:[#allocation9 + $0x1a8] sm:$0xff]
    %v273 = vld [vmem:[#allocation9 + $0x1b0] sm:$0xff]
    %v274 = vld [vmem:[#allocation9 + $0x1b8] sm:$0xff]
    %v275 = vld [vmem:[#allocation9 + $0x1c0] sm:$0xff]
    %v276 = vld [vmem:[#allocation9 + $0x1c8] sm:$0xff]
    %v277 = vld [vmem:[#allocation9 + $0x1d0] sm:$0xff]
    %v278 = vld [vmem:[#allocation9 + $0x1d8] sm:$0xff]
    %v279 = vld [vmem:[#allocation9 + $0x1e0] sm:$0xff]
    %v280 = vld [vmem:[#allocation9 + $0x1e8] sm:$0xff]
    %v281 = vld [vmem:[#allocation9 + $0x1f0] sm:$0xff]
    %v282 = vld [vmem:[#allocation9 + $0x1f8] sm:$0xff]
    %v283 = vld [vmem:[%s5] sm:$0x3]
    %v285 = vlaneseq
    %v286 = vshrl.u32 %v285, 7
    %v287 = vsub.s32 0, %v286
    %v288 = vrot.slane %v283, %v287
    %v289 = vlaneseq
    %v290 = vshrl.u32 %v289, 7
    %v291 = vsub.s32 1, %v290
    %v292 = vrot.slane %v283, %v291
    %295 = vmatprep.subr.mxu0 %v220
    %296 = vmatpush1.msra.mxu0 %v219
    %297 = vmatprep.subr.mxu0 %v222
    %298 = vmatpush1.msra.mxu0 %v221
    %299 = vmatprep.subr.mxu0 %v224
    %300 = vmatpush1.msra.mxu0 %v223
    %301 = vmatprep.subr.mxu0 %v226
    %302 = vmatpush1.msra.mxu0 %v225
    %303 = vmatprep.subr.mxu0 %v228
    %304 = vmatpush1.msra.mxu0 %v227
    %305 = vmatprep.subr.mxu0 %v230
    %306 = vmatpush1.msra.mxu0 %v229
    %307 = vmatprep.subr.mxu0 %v232
    %308 = vmatpush1.msra.mxu0 %v231
    %309 = vmatprep.subr.mxu0 %v234
    %310 = vmatpush1.msra.mxu0 %v233
    %311 = vmatprep.subr.mxu0 %v236
    %312 = vmatpush1.msra.mxu0 %v235
    %313 = vmatprep.subr.mxu0 %v238
    %314 = vmatpush1.msra.mxu0 %v237
    %315 = vmatprep.subr.mxu0 %v240
    %316 = vmatpush1.msra.mxu0 %v239
    %317 = vmatprep.subr.mxu0 %v242
    %318 = vmatpush1.msra.mxu0 %v241
    %319 = vmatprep.subr.mxu0 %v244
    %320 = vmatpush1.msra.mxu0 %v243
    %321 = vmatprep.subr.mxu0 %v246
    %322 = vmatpush1.msra.mxu0 %v245
    %323 = vmatprep.subr.mxu0 %v248
    %324 = vmatpush1.msra.mxu0 %v247
    %325 = vmatprep.subr.mxu0 %v250
    %326 = vmatpush1.msra.mxu0 %v249
    %327 = vmatprep.subr.mxu0 %v252
    %328 = vmatpush1.msra.mxu0 %v251
    %329 = vmatprep.subr.mxu0 %v254
    %330 = vmatpush1.msra.mxu0 %v253
    %331 = vmatprep.subr.mxu0 %v256
    %332 = vmatpush1.msra.mxu0 %v255
    %333 = vmatprep.subr.mxu0 %v258
    %334 = vmatpush1.msra.mxu0 %v257
    %335 = vmatprep.subr.mxu0 %v260
    %336 = vmatpush1.msra.mxu0 %v259
    %337 = vmatprep.subr.mxu0 %v262
    %338 = vmatpush1.msra.mxu0 %v261
    %339 = vmatprep.subr.mxu0 %v264
    %340 = vmatpush1.msra.mxu0 %v263
    %341 = vmatprep.subr.mxu0 %v266
    %342 = vmatpush1.msra.mxu0 %v265
    %343 = vmatprep.subr.mxu0 %v268
    %344 = vmatpush1.msra.mxu0 %v267
    %345 = vmatprep.subr.mxu0 %v270
    %346 = vmatpush1.msra.mxu0 %v269
    %347 = vmatprep.subr.mxu0 %v272
    %348 = vmatpush1.msra.mxu0 %v271
    %349 = vmatprep.subr.mxu0 %v274
    %350 = vmatpush1.msra.mxu0 %v273
    %351 = vmatprep.subr.mxu0 %v276
    %352 = vmatpush1.msra.mxu0 %v275
    %353 = vmatprep.subr.mxu0 %v278
    %354 = vmatpush1.msra.mxu0 %v277
    %355 = vmatprep.subr.mxu0 %v280
    %356 = vmatpush1.msra.mxu0 %v279
    %357 = vmatprep.subr.mxu0 %v282
    %358 = vmatpush1.msra.mxu0 %v281
    %359 = vmatprep.mubr.f32.mxu0 %v218
    %360 = vmatmul.mubr.f32.gmra.mrb[0].mxu0 %v217
    %v361 = vpop.f32.mrb[0].mxu0
    %v362 = vadd.f32 %v288, %v361
    %v363 = vpop.f32.mrb[0].mxu0
    %v364 = vadd.f32 %v292, %v363
    %365 = vdwg.mxu0
    %vm366 = vcmp.gt.f32.partialorder %v362, 0.0
    %vm367 = vcmp.gt.f32.partialorder %v364, 0.0
    %v368 = vstv %s95
    %v369 = vmul.f32 %v368, %v362
    %v370 = vmul.f32 %v368, %v364
    %v371 = vsel %vm366, %v362, %v369
    %v372 = vsel %vm367, %v364, %v370
    %v373 = vld [vmem:[#allocation10] sm:$0xff]
    %v374 = vld [vmem:[#allocation10 + $0x8] sm:$0xff]
    %v375 = vld [vmem:[#allocation10 + $0x10] sm:$0xff]
    %v376 = vld [vmem:[#allocation10 + $0x18] sm:$0xff]
    %v377 = vld [vmem:[#allocation10 + $0x20] sm:$0xff]
    %v378 = vld [vmem:[#allocation10 + $0x28] sm:$0xff]
    %v379 = vld [vmem:[#allocation10 + $0x30] sm:$0xff]
    %v380 = vld [vmem:[#allocation10 + $0x38] sm:$0xff]
    %v381 = vld [vmem:[#allocation10 + $0x40] sm:$0xff]
    %v382 = vld [vmem:[#allocation10 + $0x48] sm:$0xff]
    %v383 = vld [vmem:[#allocation10 + $0x50] sm:$0xff]
    %v384 = vld [vmem:[#allocation10 + $0x58] sm:$0xff]
    %v385 = vld [vmem:[#allocation10 + $0x60] sm:$0xff]
    %v386 = vld [vmem:[#allocation10 + $0x68] sm:$0xff]
    %v387 = vld [vmem:[#allocation10 + $0x70] sm:$0xff]
    %v388 = vld [vmem:[#allocation10 + $0x78] sm:$0xff]
    %v389 = vld [vmem:[#allocation10 + $0x80] sm:$0xff]
    %v390 = vld [vmem:[#allocation10 + $0x88] sm:$0xff]
    %v391 = vld [vmem:[#allocation10 + $0x90] sm:$0xff]
    %v392 = vld [vmem:[#allocation10 + $0x98] sm:$0xff]
    %v393 = vld [vmem:[#allocation10 + $0xa0] sm:$0xff]
    %v394 = vld [vmem:[#allocation10 + $0xa8] sm:$0xff]
    %v395 = vld [vmem:[#allocation10 + $0xb0] sm:$0xff]
    %v396 = vld [vmem:[#allocation10 + $0xb8] sm:$0xff]
    %v397 = vld [vmem:[#allocation10 + $0xc0] sm:$0xff]
    %v398 = vld [vmem:[#allocation10 + $0xc8] sm:$0xff]
    %v399 = vld [vmem:[#allocation10 + $0xd0] sm:$0xff]
    %v400 = vld [vmem:[#allocation10 + $0xd8] sm:$0xff]
    %v401 = vld [vmem:[#allocation10 + $0xe0] sm:$0xff]
    %v402 = vld [vmem:[#allocation10 + $0xe8] sm:$0xff]
    %v403 = vld [vmem:[#allocation10 + $0xf0] sm:$0xff]
    %v404 = vld [vmem:[#allocation10 + $0xf8] sm:$0xff]
    %v405 = vld [vmem:[%s7] sm:$0x1]
    %v407 = vlaneseq
    %v408 = vshrl.u32 %v407, 7
    %v409 = vsub.s32 0, %v408
    %v410 = vrot.slane %v405, %v409
    %412 = vmatprep.subr.mxu0 0.0
    %413 = vmatpush1.msra.mxu0 %v373
    %414 = vmatprep.subr.mxu0 0.0
    %415 = vmatpush1.msra.mxu0 %v374
    %416 = vmatprep.subr.mxu0 0.0
    %417 = vmatpush1.msra.mxu0 %v375
    %418 = vmatprep.subr.mxu0 0.0
    %419 = vmatpush1.msra.mxu0 %v376
    %420 = vmatprep.subr.mxu0 0.0
    %421 = vmatpush1.msra.mxu0 %v377
    %422 = vmatprep.subr.mxu0 0.0
    %423 = vmatpush1.msra.mxu0 %v378
    %424 = vmatprep.subr.mxu0 0.0
    %425 = vmatpush1.msra.mxu0 %v379
    %426 = vmatprep.subr.mxu0 0.0
    %427 = vmatpush1.msra.mxu0 %v380
    %428 = vmatprep.subr.mxu0 0.0
    %429 = vmatpush1.msra.mxu0 %v381
    %430 = vmatprep.subr.mxu0 0.0
    %431 = vmatpush1.msra.mxu0 %v382
    %432 = vmatprep.subr.mxu0 0.0
    %433 = vmatpush1.msra.mxu0 %v383
    %434 = vmatprep.subr.mxu0 0.0
    %435 = vmatpush1.msra.mxu0 %v384
    %436 = vmatprep.subr.mxu0 0.0
    %437 = vmatpush1.msra.mxu0 %v385
    %438 = vmatprep.subr.mxu0 0.0
    %439 = vmatpush1.msra.mxu0 %v386
    %440 = vmatprep.subr.mxu0 0.0
    %441 = vmatpush1.msra.mxu0 %v387
    %442 = vmatprep.subr.mxu0 0.0
    %443 = vmatpush1.msra.mxu0 %v388
    %444 = vmatprep.subr.mxu0 0.0
    %445 = vmatpush1.msra.mxu0 %v389
    %446 = vmatprep.subr.mxu0 0.0
    %447 = vmatpush1.msra.mxu0 %v390
    %448 = vmatprep.subr.mxu0 0.0
    %449 = vmatpush1.msra.mxu0 %v391
    %450 = vmatprep.subr.mxu0 0.0
    %451 = vmatpush1.msra.mxu0 %v392
    %452 = vmatprep.subr.mxu0 0.0
    %453 = vmatpush1.msra.mxu0 %v393
    %454 = vmatprep.subr.mxu0 0.0
    %455 = vmatpush1.msra.mxu0 %v394
    %456 = vmatprep.subr.mxu0 0.0
    %457 = vmatpush1.msra.mxu0 %v395
    %458 = vmatprep.subr.mxu0 0.0
    %459 = vmatpush1.msra.mxu0 %v396
    %460 = vmatprep.subr.mxu0 0.0
    %461 = vmatpush1.msra.mxu0 %v397
    %462 = vmatprep.subr.mxu0 0.0
    %463 = vmatpush1.msra.mxu0 %v398
    %464 = vmatprep.subr.mxu0 0.0
    %465 = vmatpush1.msra.mxu0 %v399
    %466 = vmatprep.subr.mxu0 0.0
    %467 = vmatpush1.msra.mxu0 %v400
    %468 = vmatprep.subr.mxu0 0.0
    %469 = vmatpush1.msra.mxu0 %v401
    %470 = vmatprep.subr.mxu0 0.0
    %471 = vmatpush1.msra.mxu0 %v402
    %472 = vmatprep.subr.mxu0 0.0
    %473 = vmatpush1.msra.mxu0 %v403
    %474 = vmatprep.subr.mxu0 0.0
    %475 = vmatpush1.msra.mxu0 %v404
    %476 = vmatprep.mubr.f32.mxu0 %v372
    %477 = vmatmul.mubr.f32.gmra.mrb[0].mxu0 %v371
    %v478 = vpop.f32.mrb[0].mxu0
    %v479 = vadd.f32 %v410, %v478
    %v480 = vpop.f32.mrb[0].mxu0
    %481 = vdwg.mxu0
    %482 = vst [vmem:[#allocation12] sm:$0xff] %v479
    // Predicated region
    $region54: #{tpu_custom_call.1} parent=1 // pred_check
      _
    $region55: #{tpu_custom_call.1} parent=1 // pred_check_branch
      %484 = sbr.rel (0) target = $region57
    $region56: #{tpu_custom_call.1} parent=1 // pred_region
      %s486 = ssub.s32 128, 128
      %487 = vsyncadd [#allocation4], %s486
      %s489 = sshll.u32 [#allocation12], 4
      %s490 = int_to_ptr.vmem [resolvable:$true] %s489
      %492 = dma.vmem_to_hbm [thread:$0]  %s490, 128, %s8, [#allocation4]
    $region57: #{tpu_custom_call.1} parent=1 // pred_fallthru
      _
    // Predicated region
    $region58: #{tpu_custom_call.1} parent=1 // pred_check
      _
    $region59: #{tpu_custom_call.1} parent=1 // pred_check_branch
      %494 = sbr.rel (0) target = $region61
    $region60: #{tpu_custom_call.1} parent=1 // pred_region
      %495 = dma.done [#allocation4], 128
    $region61: #{tpu_custom_call.1} parent=1 // pred_fallthru
      _
    %496 = vsyncpa [#allocation3], 1
    %497 = vsyncpa [#allocation8], 1
    %498 = vsyncpa [#allocation11], 1
    %499 = vsyncpa [#allocation4], 1
    %500 = vsyncpa [#allocation5], 1

</llo_original>
